<compile_context>
chip_gen: v5e
topology: v5e:2x2
jax: 0.10.0
libtpu: 0.0.40
codegen_flags: <defaults>
</compile_context>

<pallas_src>
import functools

import jax
import jax.numpy as jnp
from jax import lax
from jax.experimental import pallas as pl
from jax.experimental.pallas import tpu as pltpu


def _round_up(a: int, b: int) -> int:
    return ((a + b - 1) // b) * b


def normed_linear_kernel(x_ref, w_ref, o_ref, acc_ref, xss_ref, wss_ref):
    """One (tm, tn) output tile; K is accumulated along grid axis 2."""
    k = pl.program_id(2)

    @pl.when(k == 0)
    def _init():
        acc_ref[...] = jnp.zeros_like(acc_ref)
        xss_ref[...] = jnp.zeros_like(xss_ref)
        wss_ref[...] = jnp.zeros_like(wss_ref)

    x = x_ref[...]  # (tm, tk), native dtype -> MXU
    w = w_ref[...]  # (tk, tn), native dtype -> MXU

    # Raw (un-normalized) matmul, f32 accumulation.
    acc_ref[...] += jnp.dot(x, w, preferred_element_type=jnp.float32)

    # Partial sums of squares for the global row / column norms (f32).
    xf = x.astype(jnp.float32)
    wf = w.astype(jnp.float32)
    xss_ref[...] += jnp.sum(xf * xf, axis=1, keepdims=True)  # (tm, 1)
    wss_ref[...] += jnp.sum(wf * wf, axis=0, keepdims=True)  # (1, tn)

    @pl.when(k == pl.num_programs(2) - 1)
    def _finalize():
        # max(||v||, 1e-12) == sqrt(max(sum_sq, 1e-24)); apply as rsqrt multiply.
        eps_sq = jnp.float32(1e-24)
        row_inv = lax.rsqrt(jnp.maximum(xss_ref[...], eps_sq))  # (tm, 1)
        col_inv = lax.rsqrt(jnp.maximum(wss_ref[...], eps_sq))  # (1, tn)
        o_ref[...] = (acc_ref[...] * row_inv * col_inv).astype(o_ref.dtype)


@functools.partial(jax.jit, static_argnames=("tm", "tn", "tk"))
def normed_linear(x, weight, *, tm=256, tn=256, tk=512):
    """x: [M, K], weight: [K, N] -> [M, N] cosine-similarity linear."""
    M, K = x.shape
    Kw, N = weight.shape
    assert Kw == K, f"feature mismatch: x has {K}, weight has {Kw}"

    # Effective tile sizes: shrink to the (8,128)-rounded problem size for small
    # shapes; pad every dim to a multiple of its tile so the grid divides evenly.
    tm_e = min(tm, _round_up(M, 8))
    tk_e = min(tk, _round_up(K, 128))
    tn_e = min(tn, _round_up(N, 128))

    Mp = _round_up(M, tm_e)
    Kp = _round_up(K, tk_e)
    Np = _round_up(N, tn_e)

    xp = x if (Mp == M and Kp == K) else jnp.pad(x, ((0, Mp - M), (0, Kp - K)))
    wp = (weight if (Kp == K and Np == N)
          else jnp.pad(weight, ((0, Kp - K), (0, Np - N))))

    grid = (Mp // tm_e, Np // tn_e, Kp // tk_e)

    out_dtype = jnp.float32
    cost = pl.CostEstimate(
        flops=2 * Mp * Np * Kp + 2 * Mp * Kp + 2 * Kp * Np,
        transcendentals=Mp + Np,
        bytes_accessed=(xp.size * xp.dtype.itemsize
                        + wp.size * wp.dtype.itemsize
                        + Mp * Np * jnp.dtype(out_dtype).itemsize),
    )

    out_p = pl.pallas_call(
        normed_linear_kernel,
        out_shape=jax.ShapeDtypeStruct((Mp, Np), out_dtype),
        grid=grid,
        in_specs=[
            pl.BlockSpec((tm_e, tk_e), lambda i, j, k: (i, k)),  # x tile
            pl.BlockSpec((tk_e, tn_e), lambda i, j, k: (k, j)),  # w tile
        ],
        out_specs=pl.BlockSpec((tm_e, tn_e), lambda i, j, k: (i, j)),
        scratch_shapes=[
            pltpu.VMEM((tm_e, tn_e), jnp.float32),  # matmul accumulator
            pltpu.VMEM((tm_e, 1), jnp.float32),     # row sum-of-squares of x
            pltpu.VMEM((1, tn_e), jnp.float32),     # col sum-of-squares of w
        ],
        compiler_params=pltpu.CompilerParams(
            dimension_semantics=("parallel", "parallel", "arbitrary"),
        ),
        cost_estimate=cost,
    )(xp, wp)

    return out_p[:M, :N]


def init_normed_linear_weight(key, in_features, out_features):
    """Deterministic stand-in for the PyTorch init:
    uniform_(-1, 1).renorm_(2, 1, 1e-05).mul_(100000.0)  ->  ~unit-norm columns.
    """
    w = jax.random.uniform(
        key, (in_features, out_features), minval=-1.0, maxval=1.0,
        dtype=jnp.float32,
    )
    col_norm = jnp.sqrt(jnp.sum(w * w, axis=0, keepdims=True))
    return w / jnp.maximum(col_norm, 1e-12)


def normed_linear_ref(x, weight):
    """Pure-JAX reference."""
    eps = 1e-12
    xh = x / jnp.maximum(jnp.linalg.norm(x, axis=1, keepdims=True), eps)
    wh = weight / jnp.maximum(jnp.linalg.norm(weight, axis=0, keepdims=True), eps)
    return xh @ wh


if __name__ == "__main__":
    key = jax.random.PRNGKey(0)
    k_x, k_w, k_x2, k_w2 = jax.random.split(key, 4)

    # 1) Small shape matching the module's toy usage (exercises padding path).
    N, in_features, out_features = 8, 32, 16
    x = jax.random.normal(k_x, (N, in_features), dtype=jnp.float32)
    weight = init_normed_linear_weight(k_w, in_features, out_features)

    out = jax.block_until_ready(normed_linear(x, weight))
    ref = normed_linear_ref(x, weight)
    assert out.shape == (N, out_features)
    assert jnp.allclose(out, ref, atol=1e-5, rtol=1e-5), "mismatch vs reference (small)"

    # 2) Larger shape with explicit small tiles to exercise the K-accumulation
    #    and multi-tile grid path (3 k-steps, 2x2 output tiles).
    M2, K2, N2 = 16, 384, 256
    x2 = jax.random.normal(k_x2, (M2, K2), dtype=jnp.float32)
    w2 = init_normed_linear_weight(k_w2, K2, N2)

    out2 = jax.block_until_ready(normed_linear(x2, w2, tm=8, tn=128, tk=128))
    ref2 = normed_linear_ref(x2, w2)
    assert out2.shape == (M2, N2)
    assert jnp.allclose(out2, ref2, atol=1e-5, rtol=1e-5), "mismatch vs reference (tiled)"

    print("KERNEL_OK")
</pallas_src>

<mosaic_0001>
module attributes {stable_mosaic.version = 11 : i64} {
  func.func @normed_linear_kernel(%arg0: i32, %arg1: i32, %arg2: i32, %arg3: memref<8x128xf32, #tpu.memory_space<vmem>>, %arg4: memref<128x128xf32, #tpu.memory_space<vmem>>, %arg5: memref<8x128xf32, #tpu.memory_space<vmem>>, %arg6: memref<8x128xf32, #tpu.memory_space<vmem>>, %arg7: memref<8x1xf32, #tpu.memory_space<vmem>>, %arg8: memref<1x128xf32, #tpu.memory_space<vmem>>) attributes {dimension_semantics = [#tpu.dimension_semantics<parallel>, #tpu.dimension_semantics<parallel>, #tpu.dimension_semantics<arbitrary>], iteration_bounds = array<i64: 1, 1, 1>, scalar_prefetch = 0 : i64, scratch_operands = 3 : i64, tpu.core_type = #tpu.core_type<tc>, window_params = [{transform_indices = @transform_0, window_bounds = array<i64: 8, 128>}, {transform_indices = @transform_1, window_bounds = array<i64: 128, 128>}, {transform_indices = @transform_2, window_bounds = array<i64: 8, 128>}]} {
    %c0_i32 = arith.constant 0 : i32
    %0 = arith.cmpi eq, %arg2, %c0_i32 : i32
    %1 = arith.extui %0 : i1 to i32
    %c0_i32_0 = arith.constant 0 : i32
    %2 = arith.cmpi ne, %1, %c0_i32_0 : i32
    scf.if %2 {
      %cst_20 = arith.constant 0.000000e+00 : f32
      %24 = vector.broadcast %cst_20 : f32 to vector<8x128xf32>
      %c0_21 = arith.constant 0 : index
      %c0_22 = arith.constant 0 : index
      %25 = vector.load %arg6[%c0_21, %c0_22] : memref<8x128xf32, #tpu.memory_space<vmem>>, vector<8x128xf32>
      tpu.vector_store %arg6[%c0_21, %c0_22], %24 {strides = array<i32>} : memref<8x128xf32, #tpu.memory_space<vmem>>, vector<8x128xf32>,
      %cst_23 = arith.constant 0.000000e+00 : f32
      %26 = vector.broadcast %cst_23 : f32 to vector<8x1xf32>
      %c0_24 = arith.constant 0 : index
      %c0_25 = arith.constant 0 : index
      %27 = vector.load %arg7[%c0_24, %c0_25] : memref<8x1xf32, #tpu.memory_space<vmem>>, vector<8x1xf32>
      tpu.vector_store %arg7[%c0_24, %c0_25], %26 {strides = array<i32>} : memref<8x1xf32, #tpu.memory_space<vmem>>, vector<8x1xf32>,
      %cst_26 = arith.constant 0.000000e+00 : f32
      %28 = vector.broadcast %cst_26 : f32 to vector<1x128xf32>
      %c0_27 = arith.constant 0 : index
      %c0_28 = arith.constant 0 : index
      %29 = vector.load %arg8[%c0_27, %c0_28] : memref<1x128xf32, #tpu.memory_space<vmem>>, vector<1x128xf32>
      tpu.vector_store %arg8[%c0_27, %c0_28], %28 {strides = array<i32>} : memref<1x128xf32, #tpu.memory_space<vmem>>, vector<1x128xf32>,
    } else {
    }
    %c0 = arith.constant 0 : index
    %c0_1 = arith.constant 0 : index
    %3 = vector.load %arg3[%c0, %c0_1] : memref<8x128xf32, #tpu.memory_space<vmem>>, vector<8x128xf32>
    %c0_2 = arith.constant 0 : index
    %c0_3 = arith.constant 0 : index
    %4 = vector.load %arg4[%c0_2, %c0_3] : memref<128x128xf32, #tpu.memory_space<vmem>>, vector<128x128xf32>
    %c0_4 = arith.constant 0 : index
    %c0_5 = arith.constant 0 : index
    %5 = vector.load %arg6[%c0_4, %c0_5] : memref<8x128xf32, #tpu.memory_space<vmem>>, vector<8x128xf32>
    %cst = arith.constant dense<0.000000e+00> : vector<8x128xf32>
    %6 = tpu.matmul %3, %4, %cst {dimension_numbers = #tpu.dot_dimension_numbers<[1], [0], [0], [1], [0, 0, 1, 1], [], []>} : vector<8x128xf32>, vector<128x128xf32>, vector<8x128xf32> -> vector<8x128xf32>
    %7 = arith.addf %5, %6 : vector<8x128xf32>
    %c0_6 = arith.constant 0 : index
    %c0_7 = arith.constant 0 : index
    %8 = vector.load %arg6[%c0_6, %c0_7] : memref<8x128xf32, #tpu.memory_space<vmem>>, vector<8x128xf32>
    tpu.vector_store %arg6[%c0_6, %c0_7], %7 {strides = array<i32>} : memref<8x128xf32, #tpu.memory_space<vmem>>, vector<8x128xf32>,
    %c0_8 = arith.constant 0 : index
    %c0_9 = arith.constant 0 : index
    %9 = vector.load %arg7[%c0_8, %c0_9] : memref<8x1xf32, #tpu.memory_space<vmem>>, vector<8x1xf32>
    %10 = arith.mulf %3, %3 : vector<8x128xf32>
    %cst_10 = arith.constant dense<0.000000e+00> : vector<8xf32>
    %11 = vector.multi_reduction <add>, %10, %cst_10 [1] : vector<8x128xf32> to vector<8xf32>
    %12 = vector.shape_cast %11 : vector<8xf32> to vector<8x1xf32>
    %13 = arith.addf %9, %12 : vector<8x1xf32>
    %c0_11 = arith.constant 0 : index
    %c0_12 = arith.constant 0 : index
    %14 = vector.load %arg7[%c0_11, %c0_12] : memref<8x1xf32, #tpu.memory_space<vmem>>, vector<8x1xf32>
    tpu.vector_store %arg7[%c0_11, %c0_12], %13 {strides = array<i32>} : memref<8x1xf32, #tpu.memory_space<vmem>>, vector<8x1xf32>,
    %c0_13 = arith.constant 0 : index
    %c0_14 = arith.constant 0 : index
    %15 = vector.load %arg8[%c0_13, %c0_14] : memref<1x128xf32, #tpu.memory_space<vmem>>, vector<1x128xf32>
    %16 = arith.mulf %4, %4 : vector<128x128xf32>
    %cst_15 = arith.constant dense<0.000000e+00> : vector<128xf32>
    %17 = vector.multi_reduction <add>, %16, %cst_15 [0] : vector<128x128xf32> to vector<128xf32>
    %18 = vector.shape_cast %17 : vector<128xf32> to vector<1x128xf32>
    %19 = arith.addf %15, %18 : vector<1x128xf32>
    %c0_16 = arith.constant 0 : index
    %c0_17 = arith.constant 0 : index
    %20 = vector.load %arg8[%c0_16, %c0_17] : memref<1x128xf32, #tpu.memory_space<vmem>>, vector<1x128xf32>
    tpu.vector_store %arg8[%c0_16, %c0_17], %19 {strides = array<i32>} : memref<1x128xf32, #tpu.memory_space<vmem>>, vector<1x128xf32>,
    %c0_i32_18 = arith.constant 0 : i32
    %21 = arith.cmpi eq, %arg2, %c0_i32_18 : i32
    %22 = arith.extui %21 : i1 to i32
    %c0_i32_19 = arith.constant 0 : i32
    %23 = arith.cmpi ne, %22, %c0_i32_19 : i32
    scf.if %23 {
      %c0_20 = arith.constant 0 : index
      %c0_21 = arith.constant 0 : index
      %24 = vector.load %arg7[%c0_20, %c0_21] : memref<8x1xf32, #tpu.memory_space<vmem>>, vector<8x1xf32>
      %cst_22 = arith.constant 1.000000e-24 : f32
      %25 = vector.broadcast %cst_22 : f32 to vector<8x1xf32>
      %26 = arith.maximumf %24, %25 : vector<8x1xf32>
      %27 = math.rsqrt %26 : vector<8x1xf32>
      %c0_23 = arith.constant 0 : index
      %c0_24 = arith.constant 0 : index
      %28 = vector.load %arg8[%c0_23, %c0_24] : memref<1x128xf32, #tpu.memory_space<vmem>>, vector<1x128xf32>
      %cst_25 = arith.constant 1.000000e-24 : f32
      %29 = vector.broadcast %cst_25 : f32 to vector<1x128xf32>
      %30 = arith.maximumf %28, %29 : vector<1x128xf32>
      %31 = math.rsqrt %30 : vector<1x128xf32>
      %c0_26 = arith.constant 0 : index
      %c0_27 = arith.constant 0 : index
      %32 = vector.load %arg6[%c0_26, %c0_27] : memref<8x128xf32, #tpu.memory_space<vmem>>, vector<8x128xf32>
      %33 = vector.broadcast %27 : vector<8x1xf32> to vector<8x128xf32>
      %34 = arith.mulf %32, %33 : vector<8x128xf32>
      %35 = vector.broadcast %31 : vector<1x128xf32> to vector<8x128xf32>
      %36 = arith.mulf %34, %35 : vector<8x128xf32>
      %c0_28 = arith.constant 0 : index
      %c0_29 = arith.constant 0 : index
      %37 = vector.load %arg5[%c0_28, %c0_29] : memref<8x128xf32, #tpu.memory_space<vmem>>, vector<8x128xf32>
      tpu.vector_store %arg5[%c0_28, %c0_29], %36 {strides = array<i32>} : memref<8x128xf32, #tpu.memory_space<vmem>>, vector<8x128xf32>,
    } else {
    }
    return
  }
  func.func @transform_0(%arg0: i32, %arg1: i32, %arg2: i32) -> (i32, i32) {
    %c0_i32 = arith.constant 0 : i32
    return %arg0, %arg2 : i32, i32
  }
  func.func @transform_1(%arg0: i32, %arg1: i32, %arg2: i32) -> (i32, i32) {
    %c0_i32 = arith.constant 0 : i32
    return %arg2, %arg1 : i32, i32
  }
  func.func @transform_2(%arg0: i32, %arg1: i32, %arg2: i32) -> (i32, i32) {
    %c0_i32 = arith.constant 0 : i32
    return %arg0, %arg1 : i32, i32
  }
}

</mosaic_0001>

<llo_original>
// kernel: normed_linear.1
$region0: #{normed_linear.1}
  #allocation0 [shape = 'u32[]', space=smem, size = 0x4, offset = 0x4, fixed_abs, tag = 'smem constant byte address 0x4 - core index']
  #allocation1 [shape = 'u32[72,128]{1,0:T(1,128)}', space=vmem, size = 0x9000, scoped, tag = 'internal scratch']
  #allocation2 [shape = 'f32[8,128]{1,0:T(8,128)}', space=vmem, size = 0x1000, scoped, tag = 'scratch operand']
  #allocation3 [shape = 'f32[8,1]{1,0:T(8,128)}', space=vmem, size = 0x1000, scoped, tag = 'scratch operand']
  #allocation4 [shape = 'f32[1,128]{1,0:T(1,128)}', space=vmem, size = 0x200, scoped, tag = 'scratch operand']
  %s0 = inlined_call_operand.vmem [shape: f32[8,128], index: 0, kind: input, shape index: {}]
  %s1 = inlined_call_operand.vmem [shape: f32[128,128], index: 1, kind: input, shape index: {}]
  %s2 = inlined_call_operand.hbm [shape: f32[8,128], index: 2, kind: output, shape index: {}]
  %s3 = sld [smem:[#allocation0]]
  $region26: #{normed_linear.1} parent=0
    _
  %s5 = ssub.s32 1, %s3
  %s6 = scalar_select 0, %s5, %s3
  $region1: #{normed_linear.1} parent=0
    #allocation5 [shape = 'u8[4096]{0}', space=vmem, size = 0x1000, scoped, tag = 'output window, operand 0, single buffered']
    #allocation6 [shape = 's32[1]{0}', space=sflag, size = 0x4, scoped, tag = 'scoped memory for normed_linear.1']
    %7 = vsyncpa [#allocation6], 0
    // Predicated region
    $region2: #{normed_linear.1} parent=1 // pred_check
      _
    $region3: #{normed_linear.1} parent=1 // pred_check_branch
      %9 = sbr.rel (0) target = $region5
    $region4: #{normed_linear.1} parent=1 // pred_region
      _
    $region5: #{normed_linear.1} parent=1 // pred_fallthru
      _
    // Predicated region
    $region6: #{normed_linear.1} parent=1 // pred_check
      _
    $region7: #{normed_linear.1} parent=1 // pred_check_branch
      %11 = sbr.rel (0) target = $region9
    $region8: #{normed_linear.1} parent=1 // pred_region
      _
    $region9: #{normed_linear.1} parent=1 // pred_fallthru
      _
    %p12 = scmp.eq.s32.totalorder 0, 0
    // Predicated region
    $region10: #{normed_linear.1} parent=1 // pred_check
      %p13 = pneg %p12
    $region11: #{normed_linear.1} parent=1 // pred_check_branch
      %15 = sbr.rel (%p13) target = $region13
    $region12: #{normed_linear.1} parent=1 // pred_region
      %16 = vst [vmem:[#allocation2] sm:$0xff] 0.0
      %vm17 = vcmask 7168
      %18 = vst.msk [vmem:[#allocation3] sm:$0xff] %vm17, 0.0
      %19 = vst [vmem:[#allocation4] sm:$0x1] 0.0
    $region13: #{normed_linear.1} parent=1 // pred_fallthru
      _
    %v20 = vld [vmem:[%s0] sm:$0xff]
    %v21 = vld [vmem:[%s1] sm:$0xff]
    %v22 = vld [vmem:[%s1 + $0x8] sm:$0xff]
    %v23 = vld [vmem:[%s1 + $0x10] sm:$0xff]
    %v24 = vld [vmem:[%s1 + $0x18] sm:$0xff]
    %v25 = vld [vmem:[%s1 + $0x20] sm:$0xff]
    %v26 = vld [vmem:[%s1 + $0x28] sm:$0xff]
    %v27 = vld [vmem:[%s1 + $0x30] sm:$0xff]
    %v28 = vld [vmem:[%s1 + $0x38] sm:$0xff]
    %v29 = vld [vmem:[%s1 + $0x40] sm:$0xff]
    %v30 = vld [vmem:[%s1 + $0x48] sm:$0xff]
    %v31 = vld [vmem:[%s1 + $0x50] sm:$0xff]
    %v32 = vld [vmem:[%s1 + $0x58] sm:$0xff]
    %v33 = vld [vmem:[%s1 + $0x60] sm:$0xff]
    %v34 = vld [vmem:[%s1 + $0x68] sm:$0xff]
    %v35 = vld [vmem:[%s1 + $0x70] sm:$0xff]
    %v36 = vld [vmem:[%s1 + $0x78] sm:$0xff]
    %v37 = vld [vmem:[#allocation2] sm:$0xff]
    %38 = vmatpush.msra.mxu0 %v36
    %39 = vmatpush.msra.mxu0 %v35
    %40 = vmatpush.msra.mxu0 %v34
    %41 = vmatpush.msra.mxu0 %v33
    %42 = vmatpush.msra.mxu0 %v32
    %43 = vmatpush.msra.mxu0 %v31
    %44 = vmatpush.msra.mxu0 %v30
    %45 = vmatpush.msra.mxu0 %v29
    %46 = vmatpush.msra.mxu0 %v28
    %47 = vmatpush.msra.mxu0 %v27
    %48 = vmatpush.msra.mxu0 %v26
    %49 = vmatpush.msra.mxu0 %v25
    %50 = vmatpush.msra.mxu0 %v24
    %51 = vmatpush.msra.mxu0 %v23
    %52 = vmatpush.msra.mxu0 %v22
    %53 = vmatpush.msra.mxu0 %v21
    %54 = vmatmul.f32.gmra.mxu0 %v20
    %v55 = vpop.f32.mrf.mxu0
    %v56 = vadd.f32 0.0, %v55
    %57 = vdwg.mxu0
    %v58 = vadd.f32 %v37, %v56
    %59 = vst [vmem:[#allocation2] sm:$0xff] %v58
    %v60 = vld [vmem:[#allocation3] sm:$0xff]
    %v61 = vmul.f32 %v20, %v20
    %62 = vadd.xlane.f32.xlu0 %v61
    %v63 = vpop.xlane.xlu0 %62
    %v64 = vadd.f32 %v60, %v63
    %vm65 = vcmask 7168
    %66 = vst.msk [vmem:[#allocation3] sm:$0xff] %vm65, %v64
    %v67 = vld [vmem:[#allocation4] sm:$0x1]
    %v68 = vmul.f32 %v21, %v21
    %v69 = vmul.f32 %v22, %v22
    %v70 = vmul.f32 %v23, %v23
    %v71 = vmul.f32 %v24, %v24
    %v72 = vmul.f32 %v25, %v25
    %v73 = vmul.f32 %v26, %v26
    %v74 = vmul.f32 %v27, %v27
    %v75 = vmul.f32 %v28, %v28
    %v76 = vmul.f32 %v29, %v29
    %v77 = vmul.f32 %v30, %v30
    %v78 = vmul.f32 %v31, %v31
    %v79 = vmul.f32 %v32, %v32
    %v80 = vmul.f32 %v33, %v33
    %v81 = vmul.f32 %v34, %v34
    %v82 = vmul.f32 %v35, %v35
    %v83 = vmul.f32 %v36, %v36
    %v84 = vadd.f32 %v68, %v69
    %v85 = vadd.f32 %v84, %v70
    %v86 = vadd.f32 %v85, %v71
    %v87 = vadd.f32 %v86, %v72
    %v88 = vadd.f32 %v87, %v73
    %v89 = vadd.f32 %v88, %v74
    %v90 = vadd.f32 %v89, %v75
    %v91 = vadd.f32 %v90, %v76
    %v92 = vadd.f32 %v91, %v77
    %v93 = vadd.f32 %v92, %v78
    %v94 = vadd.f32 %v93, %v79
    %v95 = vadd.f32 %v94, %v80
    %v96 = vadd.f32 %v95, %v81
    %v97 = vadd.f32 %v96, %v82
    %v98 = vadd.f32 %v97, %v83
    %v99 = vrot.slane %v98, 4
    %v100 = vadd.f32 %v98, %v99
    %v101 = vrot.slane %v100, 2
    %v102 = vadd.f32 %v100, %v101
    %v103 = vrot.slane %v102, 1
    %v104 = vadd.f32 %v102, %v103
    %v105 = vadd.f32 %v67, %v104
    %106 = vst [vmem:[#allocation4] sm:$0x1] %v105
    // Predicated region
    $region14: #{normed_linear.1} parent=1 // pred_check
      %p107 = pneg %p12
    $region15: #{normed_linear.1} parent=1 // pred_check_branch
      %109 = sbr.rel (%p107) target = $region17
    $region16: #{normed_linear.1} parent=1 // pred_region
      %v110 = vld [vmem:[#allocation3] sm:$0xff]
      %v111 = vmax.f32 %v110, 1e-24
      %v112 = vrsqrt.pop %v111
      %v113 = vmul.f32 %v112, %v111
      %v114 = vmul.f32 %v113, %v112
      %v115 = vmul.f32 0.5, %v114
      %v116 = vsub.f32 1.5, %v115
      %v117 = vmul.f32 %v112, %v116
      %vm118 = vweird.f32 %v111
      %vm119 = vweird.f32 %v112
      %vm120 = vmor %vm118, %vm119
      %v121 = vsel %vm120, %v112, %v117
      %v122 = vld [vmem:[#allocation4] sm:$0x1]
      %v123 = vmax.f32 %v122, 1e-24
      %v124 = vrsqrt.pop %v123
      %v125 = vmul.f32 %v124, %v123
      %v126 = vmul.f32 %v125, %v124
      %v127 = vmul.f32 0.5, %v126
      %v128 = vsub.f32 1.5, %v127
      %v129 = vmul.f32 %v124, %v128
      %vm130 = vweird.f32 %v123
      %vm131 = vweird.f32 %v124
      %vm132 = vmor %vm130, %vm131
      %v133 = vsel %vm132, %v124, %v129
      %v134 = vld [vmem:[#allocation2] sm:$0xff]
      %136 = vset.pattern.permute.xlu0 0
      %137 = vperm.xlu0 %136, %v121
      %v138 = vpop.permute.xlu0 %137
      %v140 = vmul.f32 %v134, %v138
      %v142 = vperm.slane %v133, 0
      %v144 = vmul.f32 %v140, %v142
      %145 = vst [vmem:[#allocation5] sm:$0xff] %v144
    $region17: #{normed_linear.1} parent=1 // pred_fallthru
      _
    // Predicated region
    $region18: #{normed_linear.1} parent=1 // pred_check
      _
    $region19: #{normed_linear.1} parent=1 // pred_check_branch
      %147 = sbr.rel (0) target = $region21
    $region20: #{normed_linear.1} parent=1 // pred_region
      %149 = vsyncadd [#allocation6], 0
      %s151 = sshll.u32 [#allocation5], 4
      %s152 = int_to_ptr.vmem [resolvable:$true] %s151
      %s153 = sshll.u32 %s2, 4
      %s154 = int_to_ptr.hbm [resolvable:$true] %s153
      %156 = dma.vmem_to_hbm [thread:$0]  %s152, 128, %s154, [#allocation6]
    $region21: #{normed_linear.1} parent=1 // pred_fallthru
      _
    // Predicated region
    $region22: #{normed_linear.1} parent=1 // pred_check
      _
    $region23: #{normed_linear.1} parent=1 // pred_check_branch
      %158 = sbr.rel (0) target = $region25
    $region24: #{normed_linear.1} parent=1 // pred_region
      %160 = dma.done [#allocation6], 128
    $region25: #{normed_linear.1} parent=1 // pred_fallthru
      _
    %161 = vsyncpa [#allocation6], 1

</llo_original>
